<compile_context>
chip_gen: v5e
topology: v5e:2x2
jax: 0.10.0
libtpu: 0.0.40
codegen_flags: <defaults>
</compile_context>

<pallas_src>
import jax
import jax.numpy as jnp
from jax.experimental import pallas as pl
from jax.experimental.pallas import tpu as pltpu


def _round_up(a, b):
    return ((a + b - 1) // b) * b


def _pick_tiles(num_nodes):
    """Row tile (TM) x reduction tile (TK), multiples of 128 so blocks are
    (8,128)-aligned and MXU-friendly on v5e (128-wide) as well as v6e/v7x.
    For the large setting 2(fwd/bwd) x 2(double-buffer) x TM*TK bf16 = 1 MiB of
    adjacency per step - far under v7x's 64 MiB physical / 32 MiB scoped VMEM."""
    if num_nodes <= 1024:
        return 128, 128
    return 256, 512


def dir_gcn_kernel(a_ref, x_ref, w_ref, b_ref, o_ref, acc_f_ref, acc_b_ref):
    """Grid = (row tiles i, reduction tiles k).  Per step:
         a_ref : (2, TM, TK) bf16  stacked [A_fwd; A_bwd] tile
         x_ref : (TK, F_in)  bf16
         w_ref : (2*F_in, OUT_PAD) f32  [alpha*W_src^T ; (1-alpha)*W_dst^T]
         b_ref : (1, OUT_PAD)      f32  alpha*b_src + (1-alpha)*b_dst
         o_ref : (TM, OUT_PAD)     f32  written once at the last k step
       acc_*_ref: (TM, F_in) f32 scratch accumulators (persist across k)."""
    k = pl.program_id(1)

    @pl.when(k == 0)
    def _init():
        acc_f_ref[...] = jnp.zeros_like(acc_f_ref)
        acc_b_ref[...] = jnp.zeros_like(acc_b_ref)

    # Two back-to-back MXU matmuls sharing the same RHS x (x stays resident).
    x = x_ref[...]
    acc_f_ref[...] += jnp.dot(a_ref[0], x, preferred_element_type=jnp.float32)
    acc_b_ref[...] += jnp.dot(a_ref[1], x, preferred_element_type=jnp.float32)

    @pl.when(k == pl.num_programs(1) - 1)
    def _finalize():
        # alpha is folded into w_ref/b_ref -> single projection matmul + add.
        h = jnp.concatenate([acc_f_ref[...], acc_b_ref[...]], axis=-1)
        o_ref[...] = (
            jnp.dot(h, w_ref[...], preferred_element_type=jnp.float32) + b_ref[...]
        )


def dir_gcn_conv(x, edge_index, w_src, b_src, w_dst, b_dst, alpha,
                 adj_dtype=jnp.bfloat16):
    """DirGCNConv forward.  x: (N, F_in) f32; edge_index: (2, E) int32;
    w_*: (out_dim, F_in) nn.Linear weights; b_*: (out_dim,)."""
    num_nodes, in_dim = x.shape
    out_dim = w_src.shape[0]
    row, col = edge_index[0], edge_index[1]

    # ---- plain-JAX glue: degree normalisation + densified adjacencies.
    # Scatter-add matches torch.sparse_coo_tensor duplicate-edge summation.
    deg = jnp.zeros((num_nodes,), jnp.float32).at[col].add(1.0)
    dis = jnp.where(deg > 0, jax.lax.rsqrt(deg), 0.0)                 # deg^-0.5, inf->0
    a_fwd = (jnp.zeros((num_nodes, num_nodes), jnp.float32)
             .at[row, col].add(dis[row] * dis[col]))

    deg_r = jnp.zeros((num_nodes,), jnp.float32).at[row].add(1.0)
    dis_r = jnp.where(deg_r > 0, jax.lax.rsqrt(deg_r), 0.0)
    a_bwd = (jnp.zeros((num_nodes, num_nodes), jnp.float32)
             .at[col, row].add(dis_r[col] * dis_r[row]))
    # TODO(synk): for large sparse graphs, skip densification and do a CSR SpMM
    # with PrefetchScalarGridSpec (row-ptr/col-idx scalar prefetch) so HBM
    # traffic is O(E + N*F) instead of O(N^2).

    # ---- pad to lane/sublane-aligned tiles ----
    tile_m, tile_k = _pick_tiles(num_nodes)
    n_pad = _round_up(num_nodes, max(tile_m, tile_k))
    out_pad = _round_up(out_dim, 128)          # lane-dense output stores
    pad_n = n_pad - num_nodes

    # Stack fwd/bwd so each grid step streams one (2, TM, TK) block and pushes
    # x to the MXU once for both; cast A and x to bf16 (kernel is HBM-bound on
    # adjacency traffic at ~2 FLOP/byte) while accumulating in f32.
    a_stack = jnp.pad(jnp.stack([a_fwd, a_bwd], axis=0),
                      ((0, 0), (0, pad_n), (0, pad_n))).astype(adj_dtype)
    x_p = jnp.pad(x, ((0, pad_n), (0, 0))).astype(adj_dtype)

    # Fold alpha (python float OR traced scalar) into the projection weights.
    alpha = jnp.asarray(alpha, jnp.float32)
    w_comb = jnp.concatenate([alpha * w_src.T, (1.0 - alpha) * w_dst.T], axis=0)
    w_comb = jnp.pad(w_comb, ((0, 0), (0, out_pad - out_dim))).astype(jnp.float32)
    b_comb = alpha * b_src + (1.0 - alpha) * b_dst
    b_comb = jnp.pad(b_comb, (0, out_pad - out_dim)).reshape(1, out_pad).astype(jnp.float32)

    grid = (n_pad // tile_m, n_pad // tile_k)
    adj_bytes = jnp.dtype(adj_dtype).itemsize
    cost = pl.CostEstimate(
        flops=int(4 * n_pad * n_pad * in_dim + 4 * n_pad * in_dim * out_pad),
        transcendentals=0,
        bytes_accessed=int(2 * n_pad * n_pad * adj_bytes
                           + grid[0] * n_pad * in_dim * adj_bytes
                           + n_pad * out_pad * 4
                           + w_comb.size * 4 + b_comb.size * 4),
    )

    out_padded = pl.pallas_call(
        dir_gcn_kernel,
        out_shape=jax.ShapeDtypeStruct((n_pad, out_pad), jnp.float32),
        grid_spec=pltpu.PrefetchScalarGridSpec(
            num_scalar_prefetch=0,
            grid=grid,
            in_specs=[
                pl.BlockSpec((2, tile_m, tile_k), lambda i, k: (0, i, k)),
                pl.BlockSpec((tile_k, in_dim), lambda i, k: (k, 0)),
                pl.BlockSpec((2 * in_dim, out_pad), lambda i, k: (0, 0)),
                pl.BlockSpec((1, out_pad), lambda i, k: (0, 0)),
            ],
            out_specs=pl.BlockSpec((tile_m, out_pad), lambda i, k: (i, 0)),
            scratch_shapes=[
                pltpu.VMEM((tile_m, in_dim), jnp.float32),
                pltpu.VMEM((tile_m, in_dim), jnp.float32),
            ],
        ),
        compiler_params=pltpu.CompilerParams(
            # Row-tile axis is megacore-parallel (2 TCs on v7x, harmless on
            # v5e/v6e); K axis carries the f32 accumulators -> 'arbitrary'.
            dimension_semantics=("parallel", "arbitrary"),
            vmem_limit_bytes=32 * 1024 * 1024,
        ),
        cost_estimate=cost,
    )(a_stack, x_p, w_comb, b_comb)

    return out_padded[:num_nodes, :out_dim]


def dir_gcn_conv_ref(x, edge_index, w_src, b_src, w_dst, b_dst, alpha,
                     adj_dtype=jnp.float32):
    """Pure-JAX reference mirroring the PyTorch module semantics.
    adj_dtype models the kernel's bf16 rounding of A / x (accumulation in f32)."""
    num_nodes = x.shape[0]
    row, col = edge_index[0], edge_index[1]
    deg = jnp.zeros((num_nodes,), jnp.float32).at[col].add(1.0)
    dis = jnp.where(deg > 0, deg ** -0.5, 0.0)
    a_fwd = (jnp.zeros((num_nodes, num_nodes), jnp.float32)
             .at[row, col].add(dis[row] * dis[col]))
    deg_r = jnp.zeros((num_nodes,), jnp.float32).at[row].add(1.0)
    dis_r = jnp.where(deg_r > 0, deg_r ** -0.5, 0.0)
    a_bwd = (jnp.zeros((num_nodes, num_nodes), jnp.float32)
             .at[col, row].add(dis_r[col] * dis_r[row]))
    a_fwd = a_fwd.astype(adj_dtype).astype(jnp.float32)
    a_bwd = a_bwd.astype(adj_dtype).astype(jnp.float32)
    xc = x.astype(adj_dtype).astype(jnp.float32)
    out_fwd = a_fwd @ xc
    out_bwd = a_bwd @ xc
    return (alpha * (out_fwd @ w_src.T + b_src)
            + (1.0 - alpha) * (out_bwd @ w_dst.T + b_dst))


if __name__ == "__main__":
    # Small but multi-tile: n_pad=256 with (128,128) tiles -> grid=(2,2),
    # exercising both the parallel row axis and the K accumulation.
    num_nodes, num_edges = 200, 600
    input_dim, output_dim = 8, 32
    alpha = 0.3

    key = jax.random.PRNGKey(0)
    kx, ke1, ke2, kw1, kb1, kw2, kb2 = jax.random.split(key, 7)

    x = jax.random.normal(kx, (num_nodes, input_dim), dtype=jnp.float32)
    row = jax.random.randint(ke1, (num_edges,), 0, num_nodes, dtype=jnp.int32)
    col = jax.random.randint(ke2, (num_edges,), 0, num_nodes, dtype=jnp.int32)
    edge_index = jnp.stack([row, col], axis=0)

    # nn.Linear-shaped parameters: weight (out, in), bias (out,)
    bound = 1.0 / (input_dim ** 0.5)
    w_src = jax.random.uniform(kw1, (output_dim, input_dim), jnp.float32, -bound, bound)
    b_src = jax.random.uniform(kb1, (output_dim,), jnp.float32, -bound, bound)
    w_dst = jax.random.uniform(kw2, (output_dim, input_dim), jnp.float32, -bound, bound)
    b_dst = jax.random.uniform(kb2, (output_dim,), jnp.float32, -bound, bound)

    out = dir_gcn_conv(x, edge_index, w_src, b_src, w_dst, b_dst, alpha)
    out = jax.block_until_ready(out)

    # Compare against a reference that models the same bf16 rounding of A / x.
    ref = dir_gcn_conv_ref(x, edge_index, w_src, b_src, w_dst, b_dst, alpha,
                           adj_dtype=jnp.bfloat16)
    assert out.shape == (num_nodes, output_dim)
    max_err = float(jnp.max(jnp.abs(out - ref)))
    assert max_err < 1e-2, f"mismatch vs pure-JAX reference, max abs err = {max_err}"

    print("KERNEL_OK")
</pallas_src>

<mosaic_0001>
module attributes {stable_mosaic.version = 11 : i64} {
  func.func @dir_gcn_kernel(%arg0: i32, %arg1: i32, %arg2: memref<2x128x128xbf16, #tpu.memory_space<vmem>>, %arg3: memref<128x8xbf16, #tpu.memory_space<vmem>>, %arg4: memref<16x128xf32, #tpu.memory_space<vmem>>, %arg5: memref<1x128xf32, #tpu.memory_space<vmem>>, %arg6: memref<128x128xf32, #tpu.memory_space<vmem>>, %arg7: memref<128x8xf32, #tpu.memory_space<vmem>>, %arg8: memref<128x8xf32, #tpu.memory_space<vmem>>) attributes {dimension_semantics = [#tpu.dimension_semantics<parallel>, #tpu.dimension_semantics<arbitrary>], iteration_bounds = array<i64: 2, 2>, scalar_prefetch = 0 : i64, scratch_operands = 2 : i64, tpu.core_type = #tpu.core_type<tc>, window_params = [{transform_indices = @transform_0, window_bounds = array<i64: 2, 128, 128>}, {transform_indices = @transform_1, window_bounds = array<i64: 128, 8>}, {pipeline_mode = #tpu.pipeline_mode<synchronous>, transform_indices = @transform_2, window_bounds = array<i64: 16, 128>}, {pipeline_mode = #tpu.pipeline_mode<synchronous>, transform_indices = @transform_3, window_bounds = array<i64: 1, 128>}, {transform_indices = @transform_4, window_bounds = array<i64: 128, 128>}]} {
    %c0_i32 = arith.constant 0 : i32
    %0 = arith.cmpi eq, %arg1, %c0_i32 : i32
    %1 = arith.extui %0 : i1 to i32
    %c0_i32_0 = arith.constant 0 : i32
    %2 = arith.cmpi ne, %1, %c0_i32_0 : i32
    scf.if %2 {
      %cst_17 = arith.constant 0.000000e+00 : f32
      %19 = vector.broadcast %cst_17 : f32 to vector<128x8xf32>
      %c0_18 = arith.constant 0 : index
      %c0_19 = arith.constant 0 : index
      %20 = vector.load %arg7[%c0_18, %c0_19] : memref<128x8xf32, #tpu.memory_space<vmem>>, vector<128x8xf32>
      tpu.vector_store %arg7[%c0_18, %c0_19], %19 {strides = array<i32>} : memref<128x8xf32, #tpu.memory_space<vmem>>, vector<128x8xf32>,
      %cst_20 = arith.constant 0.000000e+00 : f32
      %21 = vector.broadcast %cst_20 : f32 to vector<128x8xf32>
      %c0_21 = arith.constant 0 : index
      %c0_22 = arith.constant 0 : index
      %22 = vector.load %arg8[%c0_21, %c0_22] : memref<128x8xf32, #tpu.memory_space<vmem>>, vector<128x8xf32>
      tpu.vector_store %arg8[%c0_21, %c0_22], %21 {strides = array<i32>} : memref<128x8xf32, #tpu.memory_space<vmem>>, vector<128x8xf32>,
    } else {
    }
    %c0 = arith.constant 0 : index
    %c0_1 = arith.constant 0 : index
    %3 = vector.load %arg3[%c0, %c0_1] : memref<128x8xbf16, #tpu.memory_space<vmem>>, vector<128x8xbf16>
    %c0_2 = arith.constant 0 : index
    %c0_3 = arith.constant 0 : index
    %4 = vector.load %arg7[%c0_2, %c0_3] : memref<128x8xf32, #tpu.memory_space<vmem>>, vector<128x8xf32>
    %c0_4 = arith.constant 0 : index
    %c0_5 = arith.constant 0 : index
    %c0_6 = arith.constant 0 : index
    %5 = vector.load %arg2[%c0_4, %c0_5, %c0_6] : memref<2x128x128xbf16, #tpu.memory_space<vmem>>, vector<1x128x128xbf16>
    %6 = vector.shape_cast %5 : vector<1x128x128xbf16> to vector<128x128xbf16>
    %cst = arith.constant dense<0.000000e+00> : vector<128x8xf32>
    %7 = tpu.matmul %6, %3, %cst {dimension_numbers = #tpu.dot_dimension_numbers<[1], [0], [0], [1], [0, 0, 1, 1], [], []>} : vector<128x128xbf16>, vector<128x8xbf16>, vector<128x8xf32> -> vector<128x8xf32>
    %8 = arith.addf %4, %7 : vector<128x8xf32>
    %c0_7 = arith.constant 0 : index
    %c0_8 = arith.constant 0 : index
    %9 = vector.load %arg7[%c0_7, %c0_8] : memref<128x8xf32, #tpu.memory_space<vmem>>, vector<128x8xf32>
    tpu.vector_store %arg7[%c0_7, %c0_8], %8 {strides = array<i32>} : memref<128x8xf32, #tpu.memory_space<vmem>>, vector<128x8xf32>,
    %c0_9 = arith.constant 0 : index
    %c0_10 = arith.constant 0 : index
    %10 = vector.load %arg8[%c0_9, %c0_10] : memref<128x8xf32, #tpu.memory_space<vmem>>, vector<128x8xf32>
    %c1 = arith.constant 1 : index
    %c0_11 = arith.constant 0 : index
    %c0_12 = arith.constant 0 : index
    %11 = vector.load %arg2[%c1, %c0_11, %c0_12] : memref<2x128x128xbf16, #tpu.memory_space<vmem>>, vector<1x128x128xbf16>
    %12 = vector.shape_cast %11 : vector<1x128x128xbf16> to vector<128x128xbf16>
    %cst_13 = arith.constant dense<0.000000e+00> : vector<128x8xf32>
    %13 = tpu.matmul %12, %3, %cst_13 {dimension_numbers = #tpu.dot_dimension_numbers<[1], [0], [0], [1], [0, 0, 1, 1], [], []>} : vector<128x128xbf16>, vector<128x8xbf16>, vector<128x8xf32> -> vector<128x8xf32>
    %14 = arith.addf %10, %13 : vector<128x8xf32>
    %c0_14 = arith.constant 0 : index
    %c0_15 = arith.constant 0 : index
    %15 = vector.load %arg8[%c0_14, %c0_15] : memref<128x8xf32, #tpu.memory_space<vmem>>, vector<128x8xf32>
    tpu.vector_store %arg8[%c0_14, %c0_15], %14 {strides = array<i32>} : memref<128x8xf32, #tpu.memory_space<vmem>>, vector<128x8xf32>,
    %c1_i32 = arith.constant 1 : i32
    %16 = arith.cmpi eq, %arg1, %c1_i32 : i32
    %17 = arith.extui %16 : i1 to i32
    %c0_i32_16 = arith.constant 0 : i32
    %18 = arith.cmpi ne, %17, %c0_i32_16 : i32
    scf.if %18 {
      %c0_17 = arith.constant 0 : index
      %c0_18 = arith.constant 0 : index
      %19 = vector.load %arg7[%c0_17, %c0_18] : memref<128x8xf32, #tpu.memory_space<vmem>>, vector<128x8xf32>
      %c0_19 = arith.constant 0 : index
      %c0_20 = arith.constant 0 : index
      %20 = vector.load %arg8[%c0_19, %c0_20] : memref<128x8xf32, #tpu.memory_space<vmem>>, vector<128x8xf32>
      %21 = tpu.concatenate %19, %20 in 1 : vector<128x8xf32>, vector<128x8xf32> -> vector<128x16xf32>
      %c0_21 = arith.constant 0 : index
      %c0_22 = arith.constant 0 : index
      %22 = vector.load %arg4[%c0_21, %c0_22] : memref<16x128xf32, #tpu.memory_space<vmem>>, vector<16x128xf32>
      %cst_23 = arith.constant dense<0.000000e+00> : vector<128x128xf32>
      %23 = tpu.matmul %21, %22, %cst_23 {dimension_numbers = #tpu.dot_dimension_numbers<[1], [0], [0], [1], [0, 0, 1, 1], [], []>} : vector<128x16xf32>, vector<16x128xf32>, vector<128x128xf32> -> vector<128x128xf32>
      %c0_24 = arith.constant 0 : index
      %c0_25 = arith.constant 0 : index
      %24 = vector.load %arg5[%c0_24, %c0_25] : memref<1x128xf32, #tpu.memory_space<vmem>>, vector<1x128xf32>
      %25 = vector.broadcast %24 : vector<1x128xf32> to vector<128x128xf32>
      %26 = arith.addf %23, %25 : vector<128x128xf32>
      %c0_26 = arith.constant 0 : index
      %c0_27 = arith.constant 0 : index
      %27 = vector.load %arg6[%c0_26, %c0_27] : memref<128x128xf32, #tpu.memory_space<vmem>>, vector<128x128xf32>
      tpu.vector_store %arg6[%c0_26, %c0_27], %26 {strides = array<i32>} : memref<128x128xf32, #tpu.memory_space<vmem>>, vector<128x128xf32>,
    } else {
    }
    return
  }
  func.func @transform_0(%arg0: i32, %arg1: i32) -> (i32, i32, i32) {
    %c0_i32 = arith.constant 0 : i32
    %c0_i32_0 = arith.constant 0 : i32
    return %c0_i32, %arg0, %arg1 : i32, i32, i32
  }
  func.func @transform_1(%arg0: i32, %arg1: i32) -> (i32, i32) {
    %c0_i32 = arith.constant 0 : i32
    %c0_i32_0 = arith.constant 0 : i32
    return %arg1, %c0_i32 : i32, i32
  }
  func.func @transform_2(%arg0: i32, %arg1: i32) -> (i32, i32) {
    %c0_i32 = arith.constant 0 : i32
    %c0_i32_0 = arith.constant 0 : i32
    %c0_i32_1 = arith.constant 0 : i32
    return %c0_i32, %c0_i32_0 : i32, i32
  }
  func.func @transform_3(%arg0: i32, %arg1: i32) -> (i32, i32) {
    %c0_i32 = arith.constant 0 : i32
    %c0_i32_0 = arith.constant 0 : i32
    %c0_i32_1 = arith.constant 0 : i32
    return %c0_i32, %c0_i32_0 : i32, i32
  }
  func.func @transform_4(%arg0: i32, %arg1: i32) -> (i32, i32) {
    %c0_i32 = arith.constant 0 : i32
    %c0_i32_0 = arith.constant 0 : i32
    return %arg0, %c0_i32 : i32, i32
  }
}

</mosaic_0001>

<llo_original>
// kernel: tpu_custom_call.1
$region0: #{tpu_custom_call.1}
  #allocation0 [shape = 'u32[]', space=smem, size = 0x4, offset = 0x4, fixed_abs, tag = 'smem constant byte address 0x4 - core index']
  #allocation1 [shape = 'u32[72,128]{1,0:T(1,128)}', space=vmem, size = 0x9000, scoped, tag = 'internal scratch']
  #allocation2 [shape = 'f32[128,8]{1,0:T(8,128)}', space=vmem, size = 0x10000, scoped, tag = 'scratch operand']
  #allocation3 [shape = 'f32[128,8]{1,0:T(8,128)}', space=vmem, size = 0x10000, scoped, tag = 'scratch operand']
  #allocation8 [shape = 's32[]', space=sflag, size = 0x4, offset = 0, fixed_abs, tag = 'sflag constant byte address 0x0 - dummy sync flag']
  %s0 = inlined_call_operand.hbm [shape: bf16[2,256,256], index: 0, kind: input, shape index: {}]
  %s1 = inlined_call_operand.vmem [shape: bf16[256,8], index: 1, kind: input, shape index: {}]
  %s2 = inlined_call_operand.vmem [shape: f32[16,128], index: 2, kind: input, shape index: {}]
  %s3 = inlined_call_operand.vmem [shape: f32[1,128], index: 3, kind: input, shape index: {}]
  %s4 = inlined_call_operand.hbm [shape: f32[256,128], index: 4, kind: output, shape index: {}]
  %s5 = sld [smem:[#allocation0]]
  $region61: #{tpu_custom_call.1} parent=0
    _
  %s7 = ssub.s32 1, %s5
  %s8 = scalar_select 0, %s7, %s5
  $region1: #{tpu_custom_call.1} parent=0
    #allocation4 [shape = 'u8[131072]{0}', space=vmem, size = 0x20000, scoped, tag = 'input window, operand 0']
    #allocation5 [shape = 's32[2]{0}', space=sflag, size = 0x8, scoped, tag = 'scoped memory for tpu_custom_call.1']
    #allocation6 [shape = 's32[2]{0}', space=sflag, size = 0x8, scoped, tag = 'scoped memory for tpu_custom_call.1']
    #allocation7 [shape = 'u8[131072]{0}', space=vmem, size = 0x20000, scoped, tag = 'output window, operand 0']
    %9 = vsyncpa [#allocation5], 0
    %s10 = scalar_lea.sflag [#allocation5], 1
    %11 = vsyncpa %s10, 0
    %12 = vsyncpa [#allocation6], 0
    %s13 = scalar_lea.sflag [#allocation6], 1
    %14 = vsyncpa %s13, 0
    loop: start=0, step=1, limit=6
    $region2: #{tpu_custom_call.1} parent=1 // loop_pre_header
      _
    $region3: #{tpu_custom_call.1} parent=1 // loop_header
      %s16 = sphi 0, %s20
      %p17 = scmp.ge.s32.totalorder %s16, 6
      %s23 = sphi 0, %s35
      %s24 = sphi 0, %s31
      %s25 = sphi 0, %s23
      %s26 = sphi 0, %s24
      %s27 = sphi 0, %s25
      %s28 = sphi 0, %s26
      %s40 = sphi 0, %s42
      %s43 = sphi 0, %s40
      %s44 = sphi 0, %s43
      %s60 = sphi 0, %s44
      %s66 = sphi 0, %s68
      %s69 = sphi 0, %s66
      %s70 = sphi 0, %s69
      %s86 = sphi 0, %s70
      %s90 = sphi 0, %s90
      %s92 = sphi 0, %s90
      %s93 = sphi 0, %s92
      %s107 = sphi 0, %s93
      %s111 = sphi 0, %s111
      %s113 = sphi 0, %s111
      %s114 = sphi 0, %s113
      %s128 = sphi 0, %s114
      %s134 = sphi 0, %s136
      %s137 = sphi 0, %s134
      %s138 = sphi 0, %s137
      %s154 = sphi 0, %s138
    $region4: #{tpu_custom_call.1} parent=1 // loop_header_branch
      %19 = sbr.rel (%p17) target = $region8
    $region5: #{tpu_custom_call.1} parent=1 // loop_body
      %s21 = ssub.s32 %s16, 1
      %s22 = ssub.s32 %s16, 2
      %s29 = sadd.s32 1, %s24
      %p30 = scmp.ge.s32.totalorder %s29, 2
      %s31 = scalar_select %p30, 0, %s29
      %s32 = sadd.s32 1, %s23
      %s33 = scalar_select %p30, %s32, %s23
      %p34 = scmp.ge.s32.totalorder %s33, 2
      %s35 = scalar_select %p34, 0, %s33
      %s36 = ssub.s32 %s23, %s35
      %s37 = ssub.s32 %s24, %s31
      %s38 = sor.u32 %s36, %s37
      %p39 = scmp.eq.s32.totalorder %s38, 0
      %s41 = sadd.s32 %s40, 1
      %s42 = scalar_select %p39, %s40, %s41
      %p45 = pneg %p39
      %p46 = scmp.eq.s32.totalorder %s16, 3
      %p47 = por %p45, %p46
      %p48 = scmp.ne.s32.totalorder %s40, %s43
      %p49 = scmp.eq.s32.totalorder %s16, 0
      %p50 = por %p48, %p49
      %p51 = scmp.ne.s32.totalorder %s40, %s43
      %p52 = scmp.eq.s32.totalorder %s21, 3
      %p53 = por %p51, %p52
      %p54 = scmp.ne.s32.totalorder %s43, %s44
      %p55 = scmp.eq.s32.totalorder %s21, 0
      %p56 = por %p54, %p55
      %p57 = scmp.ne.s32.totalorder %s43, %s44
      %p58 = scmp.eq.s32.totalorder %s22, 3
      %p59 = por %p57, %p58
      %p61 = scmp.ne.s32.totalorder %s44, %s60
      %p62 = scmp.eq.s32.totalorder %s22, 0
      %p63 = por %p61, %p62
      %s64 = ssub.s32 %s24, %s31
      %p65 = scmp.eq.s32.totalorder %s64, 0
      %s67 = sadd.s32 %s66, 1
      %s68 = scalar_select %p65, %s66, %s67
      %p71 = pneg %p65
      %p72 = scmp.eq.s32.totalorder %s16, 3
      %p73 = por %p71, %p72
      %p74 = scmp.ne.s32.totalorder %s66, %s69
      %p75 = scmp.eq.s32.totalorder %s16, 0
      %p76 = por %p74, %p75
      %p77 = scmp.ne.s32.totalorder %s66, %s69
      %p78 = scmp.eq.s32.totalorder %s21, 3
      %p79 = por %p77, %p78
      %p80 = scmp.ne.s32.totalorder %s69, %s70
      %p81 = scmp.eq.s32.totalorder %s21, 0
      %p82 = por %p80, %p81
      %p83 = scmp.ne.s32.totalorder %s69, %s70
      %p84 = scmp.eq.s32.totalorder %s22, 3
      %p85 = por %p83, %p84
      %p87 = scmp.ne.s32.totalorder %s70, %s86
      %p88 = scmp.eq.s32.totalorder %s22, 0
      %p89 = por %p87, %p88
      %s91 = sadd.s32 %s90, 1
      %p94 = scmp.eq.s32.totalorder %s16, 3
      %p95 = scmp.ne.s32.totalorder %s90, %s92
      %p96 = scmp.eq.s32.totalorder %s16, 0
      %p97 = por %p95, %p96
      %p98 = scmp.ne.s32.totalorder %s90, %s92
      %p99 = scmp.eq.s32.totalorder %s21, 3
      %p100 = por %p98, %p99
      %p101 = scmp.ne.s32.totalorder %s92, %s93
      %p102 = scmp.eq.s32.totalorder %s21, 0
      %p103 = por %p101, %p102
      %p104 = scmp.ne.s32.totalorder %s92, %s93
      %p105 = scmp.eq.s32.totalorder %s22, 3
      %p106 = por %p104, %p105
      %p108 = scmp.ne.s32.totalorder %s93, %s107
      %p109 = scmp.eq.s32.totalorder %s22, 0
      %p110 = por %p108, %p109
      %s112 = sadd.s32 %s111, 1
      %p115 = scmp.eq.s32.totalorder %s16, 3
      %p116 = scmp.ne.s32.totalorder %s111, %s113
      %p117 = scmp.eq.s32.totalorder %s16, 0
      %p118 = por %p116, %p117
      %p119 = scmp.ne.s32.totalorder %s111, %s113
      %p120 = scmp.eq.s32.totalorder %s21, 3
      %p121 = por %p119, %p120
      %p122 = scmp.ne.s32.totalorder %s113, %s114
      %p123 = scmp.eq.s32.totalorder %s21, 0
      %p124 = por %p122, %p123
      %p125 = scmp.ne.s32.totalorder %s113, %s114
      %p126 = scmp.eq.s32.totalorder %s22, 3
      %p127 = por %p125, %p126
      %p129 = scmp.ne.s32.totalorder %s114, %s128
      %p130 = scmp.eq.s32.totalorder %s22, 0
      %p131 = por %p129, %p130
      %s132 = ssub.s32 %s23, %s35
      %p133 = scmp.eq.s32.totalorder %s132, 0
      %s135 = sadd.s32 %s134, 1
      %s136 = scalar_select %p133, %s134, %s135
      %p139 = pneg %p133
      %p140 = scmp.eq.s32.totalorder %s16, 3
      %p141 = por %p139, %p140
      %p142 = scmp.ne.s32.totalorder %s134, %s137
      %p143 = scmp.eq.s32.totalorder %s16, 0
      %p144 = por %p142, %p143
      %p145 = scmp.ne.s32.totalorder %s134, %s137
      %p146 = scmp.eq.s32.totalorder %s21, 3
      %p147 = por %p145, %p146
      %p148 = scmp.ne.s32.totalorder %s137, %s138
      %p149 = scmp.eq.s32.totalorder %s21, 0
      %p150 = por %p148, %p149
      %p151 = scmp.ne.s32.totalorder %s137, %s138
      %p152 = scmp.eq.s32.totalorder %s22, 3
      %p153 = por %p151, %p152
      %p155 = scmp.ne.s32.totalorder %s138, %s154
      %p156 = scmp.eq.s32.totalorder %s22, 0
      %p157 = por %p155, %p156
      %p158 = scmp.le.s32.totalorder 1, %s16
      %p159 = scmp.lt.s32.totalorder %s16, 5
      %p160 = pnand %p158, %p159
      %p161 = pneg %p160
      // Predicated region
      $region9: #{tpu_custom_call.1} parent=5 // pred_check
        _
      $region10: #{tpu_custom_call.1} parent=5 // pred_check_branch
        %163 = sbr.rel (%p160) target = $region12
      $region11: #{tpu_custom_call.1} parent=5 // pred_region
        %s164 = ssub.s32 %s16, 1
        // Predicated region
        $region13: #{tpu_custom_call.1} parent=11 // pred_check
          %p165 = pneg %p103
        $region14: #{tpu_custom_call.1} parent=11 // pred_check_branch
          %167 = sbr.rel (%p165) target = $region16
        $region15: #{tpu_custom_call.1} parent=11 // pred_region
          _
        $region16: #{tpu_custom_call.1} parent=11 // pred_fallthru
          _
        // Predicated region
        $region17: #{tpu_custom_call.1} parent=11 // pred_check
          %p168 = pneg %p124
        $region18: #{tpu_custom_call.1} parent=11 // pred_check_branch
          %170 = sbr.rel (%p168) target = $region20
        $region19: #{tpu_custom_call.1} parent=11 // pred_region
          _
        $region20: #{tpu_custom_call.1} parent=11 // pred_fallthru
          _
      $region12: #{tpu_custom_call.1} parent=5 // pred_fallthru
        _
      %p171 = scmp.lt.s32.totalorder %s16, 4
      // Predicated region
      $region21: #{tpu_custom_call.1} parent=5 // pred_check
        %p172 = pneg %p171
      $region22: #{tpu_custom_call.1} parent=5 // pred_check_branch
        %174 = sbr.rel (%p172) target = $region24
      $region23: #{tpu_custom_call.1} parent=5 // pred_region
        // Predicated region
        $region25: #{tpu_custom_call.1} parent=23 // pred_check
          %p175 = pneg %p50
        $region26: #{tpu_custom_call.1} parent=23 // pred_check_branch
          %177 = sbr.rel (%p175) target = $region28
        $region27: #{tpu_custom_call.1} parent=23 // pred_region
          #allocation9 [shape = 'u32[6]{0}', space=smem, size = 0x18, scoped, tag = 'DMA stride descriptor']
          %s178 = sand.u32 %s40, 1
          %s179 = scalar_lea.sflag [#allocation5], %s178
          %s180 = sand.u32 %s40, 1
          %s181 = smul.addr %s180, 128
          %s182 = scalar_lea.vmem [#allocation4], %s181
          %s183 = smul.u32 16, %s23
          %185 = vsyncadd %s179, 0
          %s186 = smul.addr %s183, 2
          %s187 = sadd.s32 %s24, %s186
          %s188 = smul.addr %s187, 4
          %s189 = scalar_lea.hbm %s0, %s188
          %s191 = sshll.u32 1, 14
          %s192 = sxor.u32 4294967295, %s191
          %s194 = sld [smem:[#allocation0]]
          %s195 = sadd.s32 2, %s194
          %s197 = sshll.u32 7, 26
          %s198 = sxor.u32 4294967295, %s197
          %s199 = sand.u32 0, %s198
          %s200 = sshll.u32 %s195, 26
          %s201 = sor.u32 %s199, %s200
          %s202 = sshll.u32 %s189, 4
          %s203 = int_to_ptr.hbm [resolvable:$true] %s202
          %s204 = sshll.u32 %s182, 4
          %s205 = int_to_ptr.vmem [resolvable:$true] %s204
          %211 = sst [smem:[#allocation9]] 4096
          %s212 = scalar_lea.smem [#allocation9], 1
          %213 = sst [smem:[%s212]] 1024
          %s214 = scalar_lea.smem [#allocation9], 2
          %215 = sst [smem:[%s214]] 16
          %s216 = scalar_lea.smem [#allocation9], 3
          %217 = sst [smem:[%s216]] 128
          %s218 = scalar_lea.smem [#allocation9], 4
          %219 = sst [smem:[%s218]] 64
          %s220 = scalar_lea.smem [#allocation9], 5
          %221 = sst [smem:[%s220]] 4
          %223 = dma.general %s203, 2048, %s205, %s179, [#allocation8], [#allocation9], %s201, 0
        $region28: #{tpu_custom_call.1} parent=23 // pred_fallthru
          _
        // Predicated region
        $region29: #{tpu_custom_call.1} parent=23 // pred_check
          %p224 = pneg %p76
        $region30: #{tpu_custom_call.1} parent=23 // pred_check_branch
          %226 = sbr.rel (%p224) target = $region32
        $region31: #{tpu_custom_call.1} parent=23 // pred_region
          %s227 = smul.u32 16, %s24
          %p228 = scmp.lt.s32.totalorder %s227, 31
          %s229 = scalar_select %p228, %s227, 31
          %s230 = smul.addr %s229, 4
          %s231 = scalar_lea.vmem %s1, %s230
          %s232 = smul.u32 16, %s24
        $region32: #{tpu_custom_call.1} parent=23 // pred_fallthru
          _
      $region24: #{tpu_custom_call.1} parent=5 // pred_fallthru
        _
      %p233 = scmp.le.s32.totalorder 1, %s16
      %p234 = scmp.lt.s32.totalorder %s16, 5
      %p235 = pnand %p233, %p234
      %p236 = pneg %p235
      // Predicated region
      $region33: #{tpu_custom_call.1} parent=5 // pred_check
        _
      $region34: #{tpu_custom_call.1} parent=5 // pred_check_branch
        %238 = sbr.rel (%p235) target = $region36
      $region35: #{tpu_custom_call.1} parent=5 // pred_region
        %s239 = ssub.s32 %s16, 1
        %s240 = sand.u32 %s43, 1
        %s241 = scalar_lea.sflag [#allocation5], %s240
        %s242 = sand.u32 %s43, 1
        %s243 = smul.addr %s242, 128
        %s244 = scalar_lea.vmem [#allocation4], %s243
        // Predicated region
        $region37: #{tpu_custom_call.1} parent=35 // pred_check
          %p245 = pneg %p56
        $region38: #{tpu_custom_call.1} parent=35 // pred_check_branch
          %247 = sbr.rel (%p245) target = $region40
        $region39: #{tpu_custom_call.1} parent=35 // pred_region
          %249 = dma.done %s241, 2048
        $region40: #{tpu_custom_call.1} parent=35 // pred_fallthru
          _
        %s250 = sand.u32 %s43, 1
        %s251 = scalar_lea.sflag [#allocation5], %s250
        %s252 = sand.u32 %s43, 1
        %s253 = smul.addr %s252, 128
        %s254 = scalar_lea.vmem [#allocation4], %s253
        %p255 = pneg %p56
        %p256 = pneg %p53
        %s257 = smul.u32 16, %s26
        %p258 = scmp.lt.s32.totalorder %s257, 31
        %s259 = scalar_select %p258, %s257, 31
        %s260 = smul.addr %s259, 4
        %s261 = scalar_lea.vmem %s1, %s260
        %p262 = pneg %p82
        %p263 = pneg %p79
        %p264 = pneg %p103
        %p265 = pneg %p100
        %p266 = pneg %p124
        %p267 = pneg %p121
        %p268 = pneg %p150
        %p269 = pneg %p147
        %s270 = sand.u32 %s137, 1
        %s271 = scalar_lea.sflag [#allocation6], %s270
        %s272 = sand.u32 %s137, 1
        %s273 = smul.addr %s272, 128
        %s274 = scalar_lea.vmem [#allocation7], %s273
        %s275 = smul.u32 16, %s25
        %s276 = smul.u32 16, %s26
        %p277 = scmp.lt.s32.totalorder %s276, 31
        %s278 = scalar_select %p277, %s276, 31
        %s279 = smul.addr %s278, 4
        %s280 = scalar_lea.vmem %s1, %s279
        %s281 = smul.u32 16, %s26
        %s282 = smul.u32 16, %s25
        %p283 = scmp.eq.s32.totalorder %s26, 0
        // Predicated region
        $region41: #{tpu_custom_call.1} parent=35 // pred_check
          %p284 = pneg %p283
        $region42: #{tpu_custom_call.1} parent=35 // pred_check_branch
          %286 = sbr.rel (%p284) target = $region44
        $region43: #{tpu_custom_call.1} parent=35 // pred_region
          %vm287 = vcmask 64512
          %288 = vst.msk [vmem:[#allocation2] sm:$0xff] %vm287, 0.0
          %289 = vst.msk [vmem:[#allocation2 + $0x8] sm:$0xff] %vm287, 0.0
          %290 = vst.msk [vmem:[#allocation2 + $0x10] sm:$0xff] %vm287, 0.0
          %291 = vst.msk [vmem:[#allocation2 + $0x18] sm:$0xff] %vm287, 0.0
          %292 = vst.msk [vmem:[#allocation2 + $0x20] sm:$0xff] %vm287, 0.0
          %293 = vst.msk [vmem:[#allocation2 + $0x28] sm:$0xff] %vm287, 0.0
          %294 = vst.msk [vmem:[#allocation2 + $0x30] sm:$0xff] %vm287, 0.0
          %295 = vst.msk [vmem:[#allocation2 + $0x38] sm:$0xff] %vm287, 0.0
          %296 = vst.msk [vmem:[#allocation2 + $0x40] sm:$0xff] %vm287, 0.0
          %297 = vst.msk [vmem:[#allocation2 + $0x48] sm:$0xff] %vm287, 0.0
          %298 = vst.msk [vmem:[#allocation2 + $0x50] sm:$0xff] %vm287, 0.0
          %299 = vst.msk [vmem:[#allocation2 + $0x58] sm:$0xff] %vm287, 0.0
          %300 = vst.msk [vmem:[#allocation2 + $0x60] sm:$0xff] %vm287, 0.0
          %301 = vst.msk [vmem:[#allocation2 + $0x68] sm:$0xff] %vm287, 0.0
          %302 = vst.msk [vmem:[#allocation2 + $0x70] sm:$0xff] %vm287, 0.0
          %303 = vst.msk [vmem:[#allocation2 + $0x78] sm:$0xff] %vm287, 0.0
          %304 = vst.msk [vmem:[#allocation3] sm:$0xff] %vm287, 0.0
          %305 = vst.msk [vmem:[#allocation3 + $0x8] sm:$0xff] %vm287, 0.0
          %306 = vst.msk [vmem:[#allocation3 + $0x10] sm:$0xff] %vm287, 0.0
          %307 = vst.msk [vmem:[#allocation3 + $0x18] sm:$0xff] %vm287, 0.0
          %308 = vst.msk [vmem:[#allocation3 + $0x20] sm:$0xff] %vm287, 0.0
          %309 = vst.msk [vmem:[#allocation3 + $0x28] sm:$0xff] %vm287, 0.0
          %310 = vst.msk [vmem:[#allocation3 + $0x30] sm:$0xff] %vm287, 0.0
          %311 = vst.msk [vmem:[#allocation3 + $0x38] sm:$0xff] %vm287, 0.0
          %312 = vst.msk [vmem:[#allocation3 + $0x40] sm:$0xff] %vm287, 0.0
          %313 = vst.msk [vmem:[#allocation3 + $0x48] sm:$0xff] %vm287, 0.0
          %314 = vst.msk [vmem:[#allocation3 + $0x50] sm:$0xff] %vm287, 0.0
          %315 = vst.msk [vmem:[#allocation3 + $0x58] sm:$0xff] %vm287, 0.0
          %316 = vst.msk [vmem:[#allocation3 + $0x60] sm:$0xff] %vm287, 0.0
          %317 = vst.msk [vmem:[#allocation3 + $0x68] sm:$0xff] %vm287, 0.0
          %318 = vst.msk [vmem:[#allocation3 + $0x70] sm:$0xff] %vm287, 0.0
          %319 = vst.msk [vmem:[#allocation3 + $0x78] sm:$0xff] %vm287, 0.0
        $region44: #{tpu_custom_call.1} parent=35 // pred_fallthru
          _
        %v320 = vld [vmem:[%s280] sm:$0xf]
        %v321 = vld [vmem:[%s280 + $0x4] sm:$0xf]
        %v322 = vld [vmem:[%s280 + $0x8] sm:$0xf]
        %v323 = vld [vmem:[%s280 + $0xc] sm:$0xf]
        %v324 = vld [vmem:[%s280 + $0x10] sm:$0xf]
        %v325 = vld [vmem:[%s280 + $0x14] sm:$0xf]
        %v326 = vld [vmem:[%s280 + $0x18] sm:$0xf]
        %v327 = vld [vmem:[%s280 + $0x1c] sm:$0xf]
        %v328 = vld [vmem:[%s280 + $0x20] sm:$0xf]
        %v329 = vld [vmem:[%s280 + $0x24] sm:$0xf]
        %v330 = vld [vmem:[%s280 + $0x28] sm:$0xf]
        %v331 = vld [vmem:[%s280 + $0x2c] sm:$0xf]
        %v332 = vld [vmem:[%s280 + $0x30] sm:$0xf]
        %v333 = vld [vmem:[%s280 + $0x34] sm:$0xf]
        %v334 = vld [vmem:[%s280 + $0x38] sm:$0xf]
        %v335 = vld [vmem:[%s280 + $0x3c] sm:$0xf]
        %v336 = vld [vmem:[#allocation2] sm:$0xff]
        %v337 = vld [vmem:[#allocation2 + $0x8] sm:$0xff]
        %v338 = vld [vmem:[#allocation2 + $0x10] sm:$0xff]
        %v339 = vld [vmem:[#allocation2 + $0x18] sm:$0xff]
        %v340 = vld [vmem:[#allocation2 + $0x20] sm:$0xff]
        %v341 = vld [vmem:[#allocation2 + $0x28] sm:$0xff]
        %v342 = vld [vmem:[#allocation2 + $0x30] sm:$0xff]
        %v343 = vld [vmem:[#allocation2 + $0x38] sm:$0xff]
        %v344 = vld [vmem:[#allocation2 + $0x40] sm:$0xff]
        %v345 = vld [vmem:[#allocation2 + $0x48] sm:$0xff]
        %v346 = vld [vmem:[#allocation2 + $0x50] sm:$0xff]
        %v347 = vld [vmem:[#allocation2 + $0x58] sm:$0xff]
        %v348 = vld [vmem:[#allocation2 + $0x60] sm:$0xff]
        %v349 = vld [vmem:[#allocation2 + $0x68] sm:$0xff]
        %v350 = vld [vmem:[#allocation2 + $0x70] sm:$0xff]
        %v351 = vld [vmem:[#allocation2 + $0x78] sm:$0xff]
        %v352 = vld [vmem:[%s244] sm:$0xf]
        %v353 = vld [vmem:[%s244 + $0x4] sm:$0xf]
        %v354 = vld [vmem:[%s244 + $0x8] sm:$0xf]
        %v355 = vld [vmem:[%s244 + $0xc] sm:$0xf]
        %v356 = vld [vmem:[%s244 + $0x10] sm:$0xf]
        %v357 = vld [vmem:[%s244 + $0x14] sm:$0xf]
        %v358 = vld [vmem:[%s244 + $0x18] sm:$0xf]
        %v359 = vld [vmem:[%s244 + $0x1c] sm:$0xf]
        %v360 = vld [vmem:[%s244 + $0x20] sm:$0xf]
        %v361 = vld [vmem:[%s244 + $0x24] sm:$0xf]
        %v362 = vld [vmem:[%s244 + $0x28] sm:$0xf]
        %v363 = vld [vmem:[%s244 + $0x2c] sm:$0xf]
        %v364 = vld [vmem:[%s244 + $0x30] sm:$0xf]
        %v365 = vld [vmem:[%s244 + $0x34] sm:$0xf]
        %v366 = vld [vmem:[%s244 + $0x38] sm:$0xf]
        %v367 = vld [vmem:[%s244 + $0x3c] sm:$0xf]
        %v384 = vunpack.c.l.b16 %v352
        %v385 = vunpack.c.l.b16 %v353
        %v386 = vunpack.c.l.b16 %v354
        %v387 = vunpack.c.l.b16 %v355
        %v388 = vunpack.c.l.b16 %v356
        %v389 = vunpack.c.l.b16 %v357
        %v390 = vunpack.c.l.b16 %v358
        %v391 = vunpack.c.l.b16 %v359
        %v392 = vunpack.c.l.b16 %v360
        %v393 = vunpack.c.l.b16 %v361
        %v394 = vunpack.c.l.b16 %v362
        %v395 = vunpack.c.l.b16 %v363
        %v396 = vunpack.c.l.b16 %v364
        %v397 = vunpack.c.l.b16 %v365
        %v398 = vunpack.c.l.b16 %v366
        %v399 = vunpack.c.l.b16 %v367
        %v400 = vpack.c.b16 %v385, %v384
        %v401 = vpack.c.b16 %v387, %v386
        %v402 = vpack.c.b16 %v389, %v388
        %v403 = vpack.c.b16 %v391, %v390
        %v404 = vpack.c.b16 %v393, %v392
        %v405 = vpack.c.b16 %v395, %v394
        %v406 = vpack.c.b16 %v397, %v396
        %v407 = vpack.c.b16 %v399, %v398
        %v432 = vunpack.c.l.b16 %v320
        %v433 = vunpack.c.l.b16 %v321
        %v434 = vunpack.c.l.b16 %v322
        %v435 = vunpack.c.l.b16 %v323
        %v436 = vunpack.c.l.b16 %v324
        %v437 = vunpack.c.l.b16 %v325
        %v438 = vunpack.c.l.b16 %v326
        %v439 = vunpack.c.l.b16 %v327
        %v440 = vunpack.c.l.b16 %v328
        %v441 = vunpack.c.l.b16 %v329
        %v442 = vunpack.c.l.b16 %v330
        %v443 = vunpack.c.l.b16 %v331
        %v444 = vunpack.c.l.b16 %v332
        %v445 = vunpack.c.l.b16 %v333
        %v446 = vunpack.c.l.b16 %v334
        %v447 = vunpack.c.l.b16 %v335
        %v448 = vpack.c.b16 %v433, %v432
        %v449 = vpack.c.b16 %v435, %v434
        %v450 = vpack.c.b16 %v437, %v436
        %v451 = vpack.c.b16 %v439, %v438
        %v452 = vpack.c.b16 %v441, %v440
        %v453 = vpack.c.b16 %v443, %v442
        %v454 = vpack.c.b16 %v445, %v444
        %v455 = vpack.c.b16 %v447, %v446
        %464 = vmatpush.bf16.msra.mxu0 %v455
        %465 = vmatpush.bf16.msra.mxu0 %v454
        %466 = vmatpush.bf16.msra.mxu0 %v453
        %467 = vmatpush.bf16.msra.mxu0 %v452
        %468 = vmatpush.bf16.msra.mxu0 %v451
        %469 = vmatpush.bf16.msra.mxu0 %v450
        %470 = vmatpush.bf16.msra.mxu0 %v449
        %471 = vmatpush.bf16.msra.mxu0 %v448
        %472 = vmatmul.bf16.gmra.mxu0 %v400
        %v473 = vpop.f32.mrf.mxu0
        %v474 = vadd.f32 0.0, %v473
        %v475 = vpop.f32.mrf.mxu0
        %v476 = vadd.f32 0.0, %v475
        %477 = vmatmul.bf16.gmra.mxu0 %v401
        %v478 = vpop.f32.mrf.mxu0
        %v479 = vadd.f32 0.0, %v478
        %v480 = vpop.f32.mrf.mxu0
        %v481 = vadd.f32 0.0, %v480
        %482 = vmatmul.bf16.gmra.mxu0 %v402
        %v483 = vpop.f32.mrf.mxu0
        %v484 = vadd.f32 0.0, %v483
        %v485 = vpop.f32.mrf.mxu0
        %v486 = vadd.f32 0.0, %v485
        %487 = vmatmul.bf16.gmra.mxu0 %v403
        %v488 = vpop.f32.mrf.mxu0
        %v489 = vadd.f32 0.0, %v488
        %v490 = vpop.f32.mrf.mxu0
        %v491 = vadd.f32 0.0, %v490
        %492 = vmatmul.bf16.gmra.mxu0 %v404
        %v493 = vpop.f32.mrf.mxu0
        %v494 = vadd.f32 0.0, %v493
        %v495 = vpop.f32.mrf.mxu0
        %v496 = vadd.f32 0.0, %v495
        %497 = vmatmul.bf16.gmra.mxu0 %v405
        %v498 = vpop.f32.mrf.mxu0
        %v499 = vadd.f32 0.0, %v498
        %v500 = vpop.f32.mrf.mxu0
        %v501 = vadd.f32 0.0, %v500
        %502 = vmatmul.bf16.gmra.mxu0 %v406
        %v503 = vpop.f32.mrf.mxu0
        %v504 = vadd.f32 0.0, %v503
        %v505 = vpop.f32.mrf.mxu0
        %v506 = vadd.f32 0.0, %v505
        %507 = vmatmul.bf16.gmra.mxu0 %v407
        %v508 = vpop.f32.mrf.mxu0
        %v509 = vadd.f32 0.0, %v508
        %v510 = vpop.f32.mrf.mxu0
        %v511 = vadd.f32 0.0, %v510
        %512 = vdwg.mxu0
        %v513 = vadd.f32 %v336, %v474
        %v514 = vadd.f32 %v337, %v476
        %v515 = vadd.f32 %v338, %v479
        %v516 = vadd.f32 %v339, %v481
        %v517 = vadd.f32 %v340, %v484
        %v518 = vadd.f32 %v341, %v486
        %v519 = vadd.f32 %v342, %v489
        %v520 = vadd.f32 %v343, %v491
        %v521 = vadd.f32 %v344, %v494
        %v522 = vadd.f32 %v345, %v496
        %v523 = vadd.f32 %v346, %v499
        %v524 = vadd.f32 %v347, %v501
        %v525 = vadd.f32 %v348, %v504
        %v526 = vadd.f32 %v349, %v506
        %v527 = vadd.f32 %v350, %v509
        %v528 = vadd.f32 %v351, %v511
        %vm529 = vcmask 64512
        %530 = vst.msk [vmem:[#allocation2] sm:$0xff] %vm529, %v513
        %531 = vst.msk [vmem:[#allocation2 + $0x8] sm:$0xff] %vm529, %v514
        %532 = vst.msk [vmem:[#allocation2 + $0x10] sm:$0xff] %vm529, %v515
        %533 = vst.msk [vmem:[#allocation2 + $0x18] sm:$0xff] %vm529, %v516
        %534 = vst.msk [vmem:[#allocation2 + $0x20] sm:$0xff] %vm529, %v517
        %535 = vst.msk [vmem:[#allocation2 + $0x28] sm:$0xff] %vm529, %v518
        %536 = vst.msk [vmem:[#allocation2 + $0x30] sm:$0xff] %vm529, %v519
        %537 = vst.msk [vmem:[#allocation2 + $0x38] sm:$0xff] %vm529, %v520
        %538 = vst.msk [vmem:[#allocation2 + $0x40] sm:$0xff] %vm529, %v521
        %539 = vst.msk [vmem:[#allocation2 + $0x48] sm:$0xff] %vm529, %v522
        %540 = vst.msk [vmem:[#allocation2 + $0x50] sm:$0xff] %vm529, %v523
        %541 = vst.msk [vmem:[#allocation2 + $0x58] sm:$0xff] %vm529, %v524
        %542 = vst.msk [vmem:[#allocation2 + $0x60] sm:$0xff] %vm529, %v525
        %543 = vst.msk [vmem:[#allocation2 + $0x68] sm:$0xff] %vm529, %v526
        %544 = vst.msk [vmem:[#allocation2 + $0x70] sm:$0xff] %vm529, %v527
        %545 = vst.msk [vmem:[#allocation2 + $0x78] sm:$0xff] %vm529, %v528
        %v546 = vld [vmem:[#allocation3] sm:$0xff]
        %v547 = vld [vmem:[#allocation3 + $0x8] sm:$0xff]
        %v548 = vld [vmem:[#allocation3 + $0x10] sm:$0xff]
        %v549 = vld [vmem:[#allocation3 + $0x18] sm:$0xff]
        %v550 = vld [vmem:[#allocation3 + $0x20] sm:$0xff]
        %v551 = vld [vmem:[#allocation3 + $0x28] sm:$0xff]
        %v552 = vld [vmem:[#allocation3 + $0x30] sm:$0xff]
        %v553 = vld [vmem:[#allocation3 + $0x38] sm:$0xff]
        %v554 = vld [vmem:[#allocation3 + $0x40] sm:$0xff]
        %v555 = vld [vmem:[#allocation3 + $0x48] sm:$0xff]
        %v556 = vld [vmem:[#allocation3 + $0x50] sm:$0xff]
        %v557 = vld [vmem:[#allocation3 + $0x58] sm:$0xff]
        %v558 = vld [vmem:[#allocation3 + $0x60] sm:$0xff]
        %v559 = vld [vmem:[#allocation3 + $0x68] sm:$0xff]
        %v560 = vld [vmem:[#allocation3 + $0x70] sm:$0xff]
        %v561 = vld [vmem:[#allocation3 + $0x78] sm:$0xff]
        %s562 = scalar_lea.vmem %s244, 64 [#allocation4]
        %v563 = vld [vmem:[%s562] sm:$0xf]
        %v564 = vld [vmem:[%s562 + $0x4] sm:$0xf]
        %v565 = vld [vmem:[%s562 + $0x8] sm:$0xf]
        %v566 = vld [vmem:[%s562 + $0xc] sm:$0xf]
        %v567 = vld [vmem:[%s562 + $0x10] sm:$0xf]
        %v568 = vld [vmem:[%s562 + $0x14] sm:$0xf]
        %v569 = vld [vmem:[%s562 + $0x18] sm:$0xf]
        %v570 = vld [vmem:[%s562 + $0x1c] sm:$0xf]
        %v571 = vld [vmem:[%s562 + $0x20] sm:$0xf]
        %v572 = vld [vmem:[%s562 + $0x24] sm:$0xf]
        %v573 = vld [vmem:[%s562 + $0x28] sm:$0xf]
        %v574 = vld [vmem:[%s562 + $0x2c] sm:$0xf]
        %v575 = vld [vmem:[%s562 + $0x30] sm:$0xf]
        %v576 = vld [vmem:[%s562 + $0x34] sm:$0xf]
        %v577 = vld [vmem:[%s562 + $0x38] sm:$0xf]
        %v578 = vld [vmem:[%s562 + $0x3c] sm:$0xf]
        %v595 = vunpack.c.l.b16 %v563
        %v596 = vunpack.c.l.b16 %v564
        %v597 = vunpack.c.l.b16 %v565
        %v598 = vunpack.c.l.b16 %v566
        %v599 = vunpack.c.l.b16 %v567
        %v600 = vunpack.c.l.b16 %v568
        %v601 = vunpack.c.l.b16 %v569
        %v602 = vunpack.c.l.b16 %v570
        %v603 = vunpack.c.l.b16 %v571
        %v604 = vunpack.c.l.b16 %v572
        %v605 = vunpack.c.l.b16 %v573
        %v606 = vunpack.c.l.b16 %v574
        %v607 = vunpack.c.l.b16 %v575
        %v608 = vunpack.c.l.b16 %v576
        %v609 = vunpack.c.l.b16 %v577
        %v610 = vunpack.c.l.b16 %v578
        %v611 = vpack.c.b16 %v596, %v595
        %v612 = vpack.c.b16 %v598, %v597
        %v613 = vpack.c.b16 %v600, %v599
        %v614 = vpack.c.b16 %v602, %v601
        %v615 = vpack.c.b16 %v604, %v603
        %v616 = vpack.c.b16 %v606, %v605
        %v617 = vpack.c.b16 %v608, %v607
        %v618 = vpack.c.b16 %v610, %v609
        %627 = vmatpush.bf16.msra.mxu0 %v455
        %628 = vmatpush.bf16.msra.mxu0 %v454
        %629 = vmatpush.bf16.msra.mxu0 %v453
        %630 = vmatpush.bf16.msra.mxu0 %v452
        %631 = vmatpush.bf16.msra.mxu0 %v451
        %632 = vmatpush.bf16.msra.mxu0 %v450
        %633 = vmatpush.bf16.msra.mxu0 %v449
        %634 = vmatpush.bf16.msra.mxu0 %v448
        %635 = vmatmul.bf16.gmra.mxu0 %v611
        %v636 = vpop.f32.mrf.mxu0
        %v637 = vadd.f32 0.0, %v636
        %v638 = vpop.f32.mrf.mxu0
        %v639 = vadd.f32 0.0, %v638
        %640 = vmatmul.bf16.gmra.mxu0 %v612
        %v641 = vpop.f32.mrf.mxu0
        %v642 = vadd.f32 0.0, %v641
        %v643 = vpop.f32.mrf.mxu0
        %v644 = vadd.f32 0.0, %v643
        %645 = vmatmul.bf16.gmra.mxu0 %v613
        %v646 = vpop.f32.mrf.mxu0
        %v647 = vadd.f32 0.0, %v646
        %v648 = vpop.f32.mrf.mxu0
        %v649 = vadd.f32 0.0, %v648
        %650 = vmatmul.bf16.gmra.mxu0 %v614
        %v651 = vpop.f32.mrf.mxu0
        %v652 = vadd.f32 0.0, %v651
        %v653 = vpop.f32.mrf.mxu0
        %v654 = vadd.f32 0.0, %v653
        %655 = vmatmul.bf16.gmra.mxu0 %v615
        %v656 = vpop.f32.mrf.mxu0
        %v657 = vadd.f32 0.0, %v656
        %v658 = vpop.f32.mrf.mxu0
        %v659 = vadd.f32 0.0, %v658
        %660 = vmatmul.bf16.gmra.mxu0 %v616
        %v661 = vpop.f32.mrf.mxu0
        %v662 = vadd.f32 0.0, %v661
        %v663 = vpop.f32.mrf.mxu0
        %v664 = vadd.f32 0.0, %v663
        %665 = vmatmul.bf16.gmra.mxu0 %v617
        %v666 = vpop.f32.mrf.mxu0
        %v667 = vadd.f32 0.0, %v666
        %v668 = vpop.f32.mrf.mxu0
        %v669 = vadd.f32 0.0, %v668
        %670 = vmatmul.bf16.gmra.mxu0 %v618
        %v671 = vpop.f32.mrf.mxu0
        %v672 = vadd.f32 0.0, %v671
        %v673 = vpop.f32.mrf.mxu0
        %v674 = vadd.f32 0.0, %v673
        %675 = vdwg.mxu0
        %v676 = vadd.f32 %v546, %v637
        %v677 = vadd.f32 %v547, %v639
        %v678 = vadd.f32 %v548, %v642
        %v679 = vadd.f32 %v549, %v644
        %v680 = vadd.f32 %v550, %v647
        %v681 = vadd.f32 %v551, %v649
        %v682 = vadd.f32 %v552, %v652
        %v683 = vadd.f32 %v553, %v654
        %v684 = vadd.f32 %v554, %v657
        %v685 = vadd.f32 %v555, %v659
        %v686 = vadd.f32 %v556, %v662
        %v687 = vadd.f32 %v557, %v664
        %v688 = vadd.f32 %v558, %v667
        %v689 = vadd.f32 %v559, %v669
        %v690 = vadd.f32 %v560, %v672
        %v691 = vadd.f32 %v561, %v674
        %692 = vst.msk [vmem:[#allocation3] sm:$0xff] %vm529, %v676
        %693 = vst.msk [vmem:[#allocation3 + $0x8] sm:$0xff] %vm529, %v677
        %694 = vst.msk [vmem:[#allocation3 + $0x10] sm:$0xff] %vm529, %v678
        %695 = vst.msk [vmem:[#allocation3 + $0x18] sm:$0xff] %vm529, %v679
        %696 = vst.msk [vmem:[#allocation3 + $0x20] sm:$0xff] %vm529, %v680
        %697 = vst.msk [vmem:[#allocation3 + $0x28] sm:$0xff] %vm529, %v681
        %698 = vst.msk [vmem:[#allocation3 + $0x30] sm:$0xff] %vm529, %v682
        %699 = vst.msk [vmem:[#allocation3 + $0x38] sm:$0xff] %vm529, %v683
        %700 = vst.msk [vmem:[#allocation3 + $0x40] sm:$0xff] %vm529, %v684
        %701 = vst.msk [vmem:[#allocation3 + $0x48] sm:$0xff] %vm529, %v685
        %702 = vst.msk [vmem:[#allocation3 + $0x50] sm:$0xff] %vm529, %v686
        %703 = vst.msk [vmem:[#allocation3 + $0x58] sm:$0xff] %vm529, %v687
        %704 = vst.msk [vmem:[#allocation3 + $0x60] sm:$0xff] %vm529, %v688
        %705 = vst.msk [vmem:[#allocation3 + $0x68] sm:$0xff] %vm529, %v689
        %706 = vst.msk [vmem:[#allocation3 + $0x70] sm:$0xff] %vm529, %v690
        %707 = vst.msk [vmem:[#allocation3 + $0x78] sm:$0xff] %vm529, %v691
        %p708 = scmp.eq.s32.totalorder %s26, 1
        // Predicated region
        $region45: #{tpu_custom_call.1} parent=35 // pred_check
          %p709 = pneg %p708
        $region46: #{tpu_custom_call.1} parent=35 // pred_check_branch
          %711 = sbr.rel (%p709) target = $region48
        $region47: #{tpu_custom_call.1} parent=35 // pred_region
          %v712 = vld [vmem:[#allocation2] sm:$0xff]
          %v713 = vld [vmem:[#allocation2 + $0x8] sm:$0xff]
          %v714 = vld [vmem:[#allocation2 + $0x10] sm:$0xff]
          %v715 = vld [vmem:[#allocation2 + $0x18] sm:$0xff]
          %v716 = vld [vmem:[#allocation2 + $0x20] sm:$0xff]
          %v717 = vld [vmem:[#allocation2 + $0x28] sm:$0xff]
          %v718 = vld [vmem:[#allocation2 + $0x30] sm:$0xff]
          %v719 = vld [vmem:[#allocation2 + $0x38] sm:$0xff]
          %v720 = vld [vmem:[#allocation2 + $0x40] sm:$0xff]
          %v721 = vld [vmem:[#allocation2 + $0x48] sm:$0xff]
          %v722 = vld [vmem:[#allocation2 + $0x50] sm:$0xff]
          %v723 = vld [vmem:[#allocation2 + $0x58] sm:$0xff]
          %v724 = vld [vmem:[#allocation2 + $0x60] sm:$0xff]
          %v725 = vld [vmem:[#allocation2 + $0x68] sm:$0xff]
          %v726 = vld [vmem:[#allocation2 + $0x70] sm:$0xff]
          %v727 = vld [vmem:[#allocation2 + $0x78] sm:$0xff]
          %v728 = vld [vmem:[#allocation3] sm:$0xff]
          %v729 = vld [vmem:[#allocation3 + $0x8] sm:$0xff]
          %v730 = vld [vmem:[#allocation3 + $0x10] sm:$0xff]
          %v731 = vld [vmem:[#allocation3 + $0x18] sm:$0xff]
          %v732 = vld [vmem:[#allocation3 + $0x20] sm:$0xff]
          %v733 = vld [vmem:[#allocation3 + $0x28] sm:$0xff]
          %v734 = vld [vmem:[#allocation3 + $0x30] sm:$0xff]
          %v735 = vld [vmem:[#allocation3 + $0x38] sm:$0xff]
          %v736 = vld [vmem:[#allocation3 + $0x40] sm:$0xff]
          %v737 = vld [vmem:[#allocation3 + $0x48] sm:$0xff]
          %v738 = vld [vmem:[#allocation3 + $0x50] sm:$0xff]
          %v739 = vld [vmem:[#allocation3 + $0x58] sm:$0xff]
          %v740 = vld [vmem:[#allocation3 + $0x60] sm:$0xff]
          %v741 = vld [vmem:[#allocation3 + $0x68] sm:$0xff]
          %v742 = vld [vmem:[#allocation3 + $0x70] sm:$0xff]
          %v743 = vld [vmem:[#allocation3 + $0x78] sm:$0xff]
          %760 = vrot.lane.b32.xlu0 %v728, 8
          %v761 = vpop.permute.xlu0 %760
          %762 = vrot.lane.b32.xlu0 %v729, 8
          %v763 = vpop.permute.xlu0 %762
          %764 = vrot.lane.b32.xlu0 %v730, 8
          %v765 = vpop.permute.xlu0 %764
          %766 = vrot.lane.b32.xlu0 %v731, 8
          %v767 = vpop.permute.xlu0 %766
          %768 = vrot.lane.b32.xlu0 %v732, 8
          %v769 = vpop.permute.xlu0 %768
          %770 = vrot.lane.b32.xlu0 %v733, 8
          %v771 = vpop.permute.xlu0 %770
          %772 = vrot.lane.b32.xlu0 %v734, 8
          %v773 = vpop.permute.xlu0 %772
          %774 = vrot.lane.b32.xlu0 %v735, 8
          %v775 = vpop.permute.xlu0 %774
          %776 = vrot.lane.b32.xlu0 %v736, 8
          %v777 = vpop.permute.xlu0 %776
          %778 = vrot.lane.b32.xlu0 %v737, 8
          %v779 = vpop.permute.xlu0 %778
          %780 = vrot.lane.b32.xlu0 %v738, 8
          %v781 = vpop.permute.xlu0 %780
          %782 = vrot.lane.b32.xlu0 %v739, 8
          %v783 = vpop.permute.xlu0 %782
          %784 = vrot.lane.b32.xlu0 %v740, 8
          %v785 = vpop.permute.xlu0 %784
          %786 = vrot.lane.b32.xlu0 %v741, 8
          %v787 = vpop.permute.xlu0 %786
          %788 = vrot.lane.b32.xlu0 %v742, 8
          %v789 = vpop.permute.xlu0 %788
          %790 = vrot.lane.b32.xlu0 %v743, 8
          %v791 = vpop.permute.xlu0 %790
          %v808 = vsel %vm529, %v712, %v761
          %v809 = vsel %vm529, %v713, %v763
          %v810 = vsel %vm529, %v714, %v765
          %v811 = vsel %vm529, %v715, %v767
          %v812 = vsel %vm529, %v716, %v769
          %v813 = vsel %vm529, %v717, %v771
          %v814 = vsel %vm529, %v718, %v773
          %v815 = vsel %vm529, %v719, %v775
          %v816 = vsel %vm529, %v720, %v777
          %v817 = vsel %vm529, %v721, %v779
          %v818 = vsel %vm529, %v722, %v781
          %v819 = vsel %vm529, %v723, %v783
          %v820 = vsel %vm529, %v724, %v785
          %v821 = vsel %vm529, %v725, %v787
          %v822 = vsel %vm529, %v726, %v789
          %v823 = vsel %vm529, %v727, %v791
          %v824 = vld [vmem:[%s2] sm:$0xff]
          %v825 = vld [vmem:[%s2 + $0x8] sm:$0xff]
          %v826 = vld [vmem:[%s3] sm:$0x1]
          %v828 = vperm.slane %v826, 0
          %vm830 = vcmask 130048
          %v832 = vsel %vm830, %v808, 0
          %v835 = vsel %vm830, %v809, 0
          %v838 = vsel %vm830, %v810, 0
          %v841 = vsel %vm830, %v811, 0
          %v844 = vsel %vm830, %v812, 0
          %v847 = vsel %vm830, %v813, 0
          %v850 = vsel %vm830, %v814, 0
          %v853 = vsel %vm830, %v815, 0
          %v856 = vsel %vm830, %v816, 0
          %v859 = vsel %vm830, %v817, 0
          %v862 = vsel %vm830, %v818, 0
          %v865 = vsel %vm830, %v819, 0
          %v868 = vsel %vm830, %v820, 0
          %v871 = vsel %vm830, %v821, 0
          %v874 = vsel %vm830, %v822, 0
          %v877 = vsel %vm830, %v823, 0
          %879 = vmatpush.msra.mxu0 0.0
          %880 = vmatpush.msra.mxu0 0.0
          %881 = vmatpush.msra.mxu0 0.0
          %882 = vmatpush.msra.mxu0 0.0
          %883 = vmatpush.msra.mxu0 0.0
          %884 = vmatpush.msra.mxu0 0.0
          %885 = vmatpush.msra.mxu0 0.0
          %886 = vmatpush.msra.mxu0 0.0
          %887 = vmatpush.msra.mxu0 0.0
          %888 = vmatpush.msra.mxu0 0.0
          %889 = vmatpush.msra.mxu0 0.0
          %890 = vmatpush.msra.mxu0 0.0
          %891 = vmatpush.msra.mxu0 0.0
          %892 = vmatpush.msra.mxu0 0.0
          %893 = vmatpush.msra.mxu0 %v825
          %894 = vmatpush.msra.mxu0 %v824
          %895 = vmatmul.f32.gmra.mxu0 %v832
          %v896 = vpop.f32.mrf.mxu0
          %v897 = vadd.f32 %v828, %v896
          %898 = vmatmul.f32.gmra.mxu0 %v835
          %v899 = vpop.f32.mrf.mxu0
          %v900 = vadd.f32 %v828, %v899
          %901 = vmatmul.f32.gmra.mxu0 %v838
          %v902 = vpop.f32.mrf.mxu0
          %v903 = vadd.f32 %v828, %v902
          %904 = vmatmul.f32.gmra.mxu0 %v841
          %v905 = vpop.f32.mrf.mxu0
          %v906 = vadd.f32 %v828, %v905
          %907 = vmatmul.f32.gmra.mxu0 %v844
          %v908 = vpop.f32.mrf.mxu0
          %v909 = vadd.f32 %v828, %v908
          %910 = vmatmul.f32.gmra.mxu0 %v847
          %v911 = vpop.f32.mrf.mxu0
          %v912 = vadd.f32 %v828, %v911
          %913 = vmatmul.f32.gmra.mxu0 %v850
          %v914 = vpop.f32.mrf.mxu0
          %v915 = vadd.f32 %v828, %v914
          %916 = vmatmul.f32.gmra.mxu0 %v853
          %v917 = vpop.f32.mrf.mxu0
          %v918 = vadd.f32 %v828, %v917
          %919 = vmatmul.f32.gmra.mxu0 %v856
          %v920 = vpop.f32.mrf.mxu0
          %v921 = vadd.f32 %v828, %v920
          %922 = vmatmul.f32.gmra.mxu0 %v859
          %v923 = vpop.f32.mrf.mxu0
          %v924 = vadd.f32 %v828, %v923
          %925 = vmatmul.f32.gmra.mxu0 %v862
          %v926 = vpop.f32.mrf.mxu0
          %v927 = vadd.f32 %v828, %v926
          %928 = vmatmul.f32.gmra.mxu0 %v865
          %v929 = vpop.f32.mrf.mxu0
          %v930 = vadd.f32 %v828, %v929
          %931 = vmatmul.f32.gmra.mxu0 %v868
          %v932 = vpop.f32.mrf.mxu0
          %v933 = vadd.f32 %v828, %v932
          %934 = vmatmul.f32.gmra.mxu0 %v871
          %v935 = vpop.f32.mrf.mxu0
          %v936 = vadd.f32 %v828, %v935
          %937 = vmatmul.f32.gmra.mxu0 %v874
          %v938 = vpop.f32.mrf.mxu0
          %v939 = vadd.f32 %v828, %v938
          %940 = vmatmul.f32.gmra.mxu0 %v877
          %v941 = vpop.f32.mrf.mxu0
          %v942 = vadd.f32 %v828, %v941
          %943 = vdwg.mxu0
          %944 = vst [vmem:[%s274] sm:$0xff] %v897
          %945 = vst [vmem:[%s274 + $0x8] sm:$0xff] %v900
          %946 = vst [vmem:[%s274 + $0x10] sm:$0xff] %v903
          %947 = vst [vmem:[%s274 + $0x18] sm:$0xff] %v906
          %948 = vst [vmem:[%s274 + $0x20] sm:$0xff] %v909
          %949 = vst [vmem:[%s274 + $0x28] sm:$0xff] %v912
          %950 = vst [vmem:[%s274 + $0x30] sm:$0xff] %v915
          %951 = vst [vmem:[%s274 + $0x38] sm:$0xff] %v918
          %952 = vst [vmem:[%s274 + $0x40] sm:$0xff] %v921
          %953 = vst [vmem:[%s274 + $0x48] sm:$0xff] %v924
          %954 = vst [vmem:[%s274 + $0x50] sm:$0xff] %v927
          %955 = vst [vmem:[%s274 + $0x58] sm:$0xff] %v930
          %956 = vst [vmem:[%s274 + $0x60] sm:$0xff] %v933
          %957 = vst [vmem:[%s274 + $0x68] sm:$0xff] %v936
          %958 = vst [vmem:[%s274 + $0x70] sm:$0xff] %v939
          %959 = vst [vmem:[%s274 + $0x78] sm:$0xff] %v942
        $region48: #{tpu_custom_call.1} parent=35 // pred_fallthru
          _
        %s960 = sand.u32 %s137, 1
        %s961 = scalar_lea.sflag [#allocation6], %s960
        %s962 = sand.u32 %s137, 1
        %s963 = smul.addr %s962, 128
        %s964 = scalar_lea.vmem [#allocation7], %s963
        // Predicated region
        $region49: #{tpu_custom_call.1} parent=35 // pred_check
          %p965 = pneg %p147
        $region50: #{tpu_custom_call.1} parent=35 // pred_check_branch
          %967 = sbr.rel (%p965) target = $region52
        $region51: #{tpu_custom_call.1} parent=35 // pred_region
          %s968 = smul.u32 16, %s25
          %970 = vsyncadd %s961, 0
          %s971 = smul.addr %s968, 8
          %s972 = scalar_lea.hbm %s4, %s971
          %s973 = sshll.u32 %s964, 4
          %s974 = int_to_ptr.vmem [resolvable:$true] %s973
          %s975 = sshll.u32 %s972, 4
          %s976 = int_to_ptr.hbm [resolvable:$true] %s975
          %981 = dma.vmem_to_hbm [thread:$0]  %s974, 2048, %s976, %s961, 128, 128, 8
        $region52: #{tpu_custom_call.1} parent=35 // pred_fallthru
          _
      $region36: #{tpu_custom_call.1} parent=5 // pred_fallthru
        _
      %p982 = scmp.le.s32.totalorder 2, %s16
      // Predicated region
      $region53: #{tpu_custom_call.1} parent=5 // pred_check
        %p983 = pneg %p982
      $region54: #{tpu_custom_call.1} parent=5 // pred_check_branch
        %985 = sbr.rel (%p983) target = $region56
      $region55: #{tpu_custom_call.1} parent=5 // pred_region
        %s986 = ssub.s32 %s16, 2
        // Predicated region
        $region57: #{tpu_custom_call.1} parent=55 // pred_check
          %p987 = pneg %p153
        $region58: #{tpu_custom_call.1} parent=55 // pred_check_branch
          %989 = sbr.rel (%p987) target = $region60
        $region59: #{tpu_custom_call.1} parent=55 // pred_region
          %s990 = sand.u32 %s138, 1
          %s991 = scalar_lea.sflag [#allocation6], %s990
          %s992 = sand.u32 %s138, 1
          %s993 = smul.addr %s992, 128
          %s994 = scalar_lea.vmem [#allocation7], %s993
          %996 = dma.done %s991, 2048
        $region60: #{tpu_custom_call.1} parent=55 // pred_fallthru
          _
      $region56: #{tpu_custom_call.1} parent=5 // pred_fallthru
        _
    $region6: #{tpu_custom_call.1} parent=1 // loop_footer
      %s20 = sadd.s32 1, %s16
    $region7: #{tpu_custom_call.1} parent=1 // loop_footer_branch
      %15 = sbr.rel target = $region3
    $region8: #{tpu_custom_call.1} parent=1 // loop_exit
      _
    %997 = vsyncpa [#allocation5], 1
    %s998 = scalar_lea.sflag [#allocation5], 1
    %999 = vsyncpa %s998, 1
    %1000 = vsyncpa [#allocation6], 1
    %s1001 = scalar_lea.sflag [#allocation6], 1
    %1002 = vsyncpa %s1001, 1

</llo_original>
